<compile_context>
chip_gen: v5e
topology: v5e:2x2
jax: 0.10.0
libtpu: 0.0.40
codegen_flags: <defaults>
</compile_context>

<pallas_src>
import jax
import jax.numpy as jnp
from jax.experimental import pallas as pl
from jax.experimental.pallas import tpu as pltpu  # noqa: F401  (TPU backend assumed)

# ----- small, TPU-friendly configuration consistent with the module ----------
B = 2              # batch
N = 8              # sequence length (number of tabular feature tokens)
D = 16             # input_embed_dim
NUM_HEADS = 4      # num_heads (D % NUM_HEADS == 0)
HEAD_DIM = D       # transformer_head_dim=None -> head_dim = input_embed_dim
INNER = NUM_HEADS * HEAD_DIM        # 64
FF_MULT = 4
FF_DIM = D * FF_MULT                # 64
BN = B * N                          # 16 rows
G = B * NUM_HEADS                   # fused (batch, head) dim for attention
LN_EPS = 1e-5
SCALE = HEAD_DIM ** (-0.5)

QKV_W = 3 * INNER                   # 192 lanes (fused QKV weight width)
FF2_W = 2 * FF_DIM                  # 128 lanes (fused [W1 | Wv] width)


def _gelu_exact(x):
    # nn.GELU() default: exact erf-based GELU
    return 0.5 * x * (1.0 + jax.lax.erf(x / jnp.sqrt(2.0).astype(x.dtype)))


def _layernorm(z, gamma, beta):
    mu = jnp.mean(z, axis=-1, keepdims=True)
    var = jnp.mean((z - mu) * (z - mu), axis=-1, keepdims=True)
    return (z - mu) * jax.lax.rsqrt(var + LN_EPS) * gamma + beta


# ----------------------------- Pallas kernel ---------------------------------
def encoder_block_kernel(
    x_ref,       # (BN, D)                 f32   flattened input rows
    wa_ref,      # (D, QKV_W + FF2_W)      bf16  [Wq*scale | Wk | Wv_attn | W1 | Wv_ff]
    wb_ref,      # (INNER + FF_DIM, D)     bf16  [W_out ; W2]
    small_ref,   # (5, D)                  f32   [b_out, ln1_g, ln1_b, ln2_g, ln2_b]
    o_ref,       # (BN, D)                 f32
):
    f32 = jnp.float32
    bf16 = jnp.bfloat16

    x = x_ref[...]                                   # (BN, D) f32
    bout = small_ref[0:1, :]
    ln1_g = small_ref[1:2, :]
    ln1_b = small_ref[2:3, :]
    ln2_g = small_ref[3:4, :]
    ln2_b = small_ref[4:5, :]

    xb = x.astype(bf16)

    # -------- fused QKV projection: single (BN,D)@(D,192) matmul, scale pre-folded into Q -----
    qkv = jnp.dot(xb, wa_ref[:, 0:QKV_W], preferred_element_type=f32)     # (BN, 192) f32

    # per-head (batch,head)-stacked views via static lane slices; (BN,HD)->(B,N,HD) is a
    # pure leading/sublane regroup (no lane movement).
    def gstack(base):
        heads = [
            qkv[:, base + h * HEAD_DIM: base + (h + 1) * HEAD_DIM].reshape(B, N, HEAD_DIM)
            for h in range(NUM_HEADS)
        ]
        return jnp.concatenate(heads, axis=0)        # (G, N, HD), group g = h*B + b

    qg = gstack(0).astype(bf16)
    kg = gstack(INNER).astype(bf16)
    vg = gstack(2 * INNER).astype(bf16)

    # -------- per-(batch,head) attention as one G-batched matmul pair --------
    sim = jnp.einsum('gne,gme->gnm', qg, kg, preferred_element_type=f32)  # (G, N, N)
    sim = sim - jnp.max(sim, axis=-1, keepdims=True)
    p = jnp.exp(sim)
    attn = p * pl.reciprocal(jnp.sum(p, axis=-1, keepdims=True), approx=True)
    # TODO(synk): keep_attn stores attention weights as a module attribute (side effect only).
    oh = jnp.einsum('gnm,gme->gne', attn.astype(bf16), vg,
                    preferred_element_type=f32)                            # (G, N, HD)

    # concat heads back along lanes -> (BN, INNER); row (b,n) = [head0 | head1 | head2 | head3]
    oh2 = jnp.concatenate(
        [oh[h * B:(h + 1) * B].reshape(BN, HEAD_DIM) for h in range(NUM_HEADS)], axis=-1)

    # -------- single output-projection matmul (+ bias) --------
    y = jnp.dot(oh2.astype(bf16), wb_ref[0:INNER, :],
                preferred_element_type=f32) + bout                         # (BN, D)

    # -------- attn AddNorm (dropout = identity) --------
    x1 = _layernorm(y + x, ln1_g, ln1_b)                                   # (BN, D)

    # -------- GEGLU FF on the *pre-addnorm* MHA output y: one (BN,D)@(D,128) matmul --------
    h12 = jnp.dot(y.astype(bf16), wa_ref[:, QKV_W:QKV_W + FF2_W],
                  preferred_element_type=f32)                              # (BN, 128)
    gate = _gelu_exact(h12[:, 0:FF_DIM])
    val = h12[:, FF_DIM:FF2_W]
    ff = jnp.dot((gate * val).astype(bf16), wb_ref[INNER:INNER + FF_DIM, :],
                 preferred_element_type=f32)                               # (BN, D)

    # -------- ff AddNorm (dropout = identity) --------
    o_ref[...] = _layernorm(ff + x1, ln2_g, ln2_b).astype(o_ref.dtype)


# ----------------------------- cost estimate ----------------------------------
def _flops():
    mm = lambda m, k, n: 2 * m * k * n
    f = mm(BN, D, QKV_W)            # fused QKV projection
    f += G * mm(N, HEAD_DIM, N)     # q @ k^T   (per-head, inherent)
    f += G * mm(N, N, HEAD_DIM)     # attn @ v  (per-head, inherent)
    f += mm(BN, INNER, D)           # out projection
    f += mm(BN, D, FF2_W)           # fused GEGLU [W1 | Wv]
    f += mm(BN, FF_DIM, D)          # W2
    return f


_COST = pl.CostEstimate(
    flops=_flops(),
    transcendentals=G * N * N + BN * FF_DIM + 2 * BN + G * N,
    bytes_accessed=(4 * (2 * BN * D + 5 * D)                       # x, out, small slab (f32)
                    + 2 * (D * (QKV_W + FF2_W) + (INNER + FF_DIM) * D)),  # bf16 weight slabs
)


# ----------------------------- wrapper -----------------------------------------
@jax.jit
def transformer_encoder_block(x, params):
    (wqkv_t, wout_t, bout, ln1_g, ln1_b, w1_t, wv_t, w2_t, ln2_g, ln2_b) = params

    # wrapper-side layout plumbing (outside the kernel):
    #  * fold the softmax scale into the Q projection columns (deletes a VPU mul on sim),
    #  * pack [Wqkv | W1 | Wv] into one lane-dense (D, 320) bf16 slab,
    #  * pack [W_out ; W2] into one (INNER+FF_DIM, D) bf16 slab,
    #  * pack bias + both LayerNorm gamma/beta into one (5, D) f32 slab,
    #  * flatten x / output to lane-dense (B*N, D).
    wq, wk, wv_attn = jnp.split(wqkv_t, 3, axis=-1)
    wqkv_scaled = jnp.concatenate([wq * SCALE, wk, wv_attn], axis=-1)            # (D, 192)
    wa = jnp.concatenate([wqkv_scaled, w1_t, wv_t], axis=-1).astype(jnp.bfloat16)  # (D, 320)
    wb = jnp.concatenate([wout_t, w2_t], axis=0).astype(jnp.bfloat16)            # (128, D)
    small = jnp.concatenate([bout, ln1_g, ln1_b, ln2_g, ln2_b], axis=0)          # (5, D) f32

    out2d = pl.pallas_call(
        encoder_block_kernel,
        out_shape=jax.ShapeDtypeStruct((BN, D), jnp.float32),
        cost_estimate=_COST,
    )(x.reshape(BN, D), wa, wb, small)
    return out2d.reshape(B, N, D)


# ----------------------------- pure-JAX reference ------------------------------
def reference(x, params):
    (wqkv_t, wout_t, bout, ln1_g, ln1_b, w1_t, wv_t, w2_t, ln2_g, ln2_b) = params
    b = x.shape[0]
    qkv = x @ wqkv_t                                         # (B, N, 3*INNER)
    q, k, v = jnp.split(qkv, 3, axis=-1)

    def heads(t):
        return t.reshape(b, -1, NUM_HEADS, HEAD_DIM).transpose(0, 2, 1, 3)

    q, k, v = heads(q), heads(k), heads(v)                   # (B, H, N, HD)
    sim = jnp.einsum("bhnd,bhmd->bhnm", q, k) * SCALE
    attn = jax.nn.softmax(sim, axis=-1)
    out = jnp.einsum("bhnm,bhmd->bhnd", attn, v)
    out = out.transpose(0, 2, 1, 3).reshape(b, -1, INNER)
    y = out @ wout_t + bout
    x1 = _layernorm(y + x, ln1_g, ln1_b)
    g = _gelu_exact(y @ w1_t)
    ff = (g * (y @ wv_t)) @ w2_t
    return _layernorm(ff + x1, ln2_g, ln2_b)


# ----------------------------- main --------------------------------------------
if __name__ == "__main__":
    key = jax.random.PRNGKey(0)
    keys = jax.random.split(key, 12)

    x = jax.random.normal(keys[0], (B, N, D), dtype=jnp.float32)

    # deterministic synthetic parameters (pre-transposed to (in, out), torch layout preserved)
    wqkv_t = 0.05 * jax.random.normal(keys[1], (D, 3 * INNER), dtype=jnp.float32)
    wout_t = 0.05 * jax.random.normal(keys[2], (INNER, D), dtype=jnp.float32)
    bout   = 0.01 * jax.random.normal(keys[3], (1, D), dtype=jnp.float32)
    ln1_g  = 1.0 + 0.1 * jax.random.normal(keys[4], (1, D), dtype=jnp.float32)
    ln1_b  = 0.05 * jax.random.normal(keys[5], (1, D), dtype=jnp.float32)
    w1_t   = 0.05 * jax.random.normal(keys[6], (D, FF_DIM), dtype=jnp.float32)
    wv_t   = 0.05 * jax.random.normal(keys[7], (D, FF_DIM), dtype=jnp.float32)
    w2_t   = 0.05 * jax.random.normal(keys[8], (FF_DIM, D), dtype=jnp.float32)
    ln2_g  = 1.0 + 0.1 * jax.random.normal(keys[9], (1, D), dtype=jnp.float32)
    ln2_b  = 0.05 * jax.random.normal(keys[10], (1, D), dtype=jnp.float32)

    params = (wqkv_t, wout_t, bout, ln1_g, ln1_b, w1_t, wv_t, w2_t, ln2_g, ln2_b)

    out = transformer_encoder_block(x, params)
    out = jax.block_until_ready(out)

    ref = reference(x, params)
    assert out.shape == (B, N, D)
    # bf16 MXU inputs (f32 accumulation) + approx=True softmax reciprocal vs. the exact-f32
    # reference -> re-validated tolerance 1e-2 (per review's correctness note on adopting bf16).
    assert jnp.allclose(out, ref, rtol=1e-2, atol=1e-2), float(jnp.max(jnp.abs(out - ref)))

    print("KERNEL_OK")
</pallas_src>

<mosaic_0001>
module attributes {stable_mosaic.version = 11 : i64} {
  func.func @encoder_block_kernel(%arg0: memref<16x16xf32, #tpu.memory_space<vmem>>, %arg1: memref<16x320xbf16, #tpu.memory_space<vmem>>, %arg2: memref<128x16xbf16, #tpu.memory_space<vmem>>, %arg3: memref<5x16xf32, #tpu.memory_space<vmem>>, %arg4: memref<16x16xf32, #tpu.memory_space<vmem>>) attributes {dimension_semantics = [], scalar_prefetch = 0 : i64, scratch_operands = 0 : i64, tpu.core_type = #tpu.core_type<tc>} {
    %c0 = arith.constant 0 : index
    %c0_0 = arith.constant 0 : index
    %0 = vector.load %arg0[%c0, %c0_0] : memref<16x16xf32, #tpu.memory_space<vmem>>, vector<16x16xf32>
    %c0_1 = arith.constant 0 : index
    %c0_2 = arith.constant 0 : index
    %1 = vector.load %arg3[%c0_1, %c0_2] : memref<5x16xf32, #tpu.memory_space<vmem>>, vector<1x16xf32>
    %c1 = arith.constant 1 : index
    %c0_3 = arith.constant 0 : index
    %2 = vector.load %arg3[%c1, %c0_3] : memref<5x16xf32, #tpu.memory_space<vmem>>, vector<1x16xf32>
    %c2 = arith.constant 2 : index
    %c0_4 = arith.constant 0 : index
    %3 = vector.load %arg3[%c2, %c0_4] : memref<5x16xf32, #tpu.memory_space<vmem>>, vector<1x16xf32>
    %c3 = arith.constant 3 : index
    %c0_5 = arith.constant 0 : index
    %4 = vector.load %arg3[%c3, %c0_5] : memref<5x16xf32, #tpu.memory_space<vmem>>, vector<1x16xf32>
    %c4 = arith.constant 4 : index
    %c0_6 = arith.constant 0 : index
    %5 = vector.load %arg3[%c4, %c0_6] : memref<5x16xf32, #tpu.memory_space<vmem>>, vector<1x16xf32>
    %6 = arith.truncf %0 : vector<16x16xf32> to vector<16x16xbf16>
    %c0_7 = arith.constant 0 : index
    %c0_8 = arith.constant 0 : index
    %7 = vector.load %arg1[%c0_7, %c0_8] : memref<16x320xbf16, #tpu.memory_space<vmem>>, vector<16x192xbf16>
    %cst = arith.constant dense<0.000000e+00> : vector<16x192xf32>
    %8 = tpu.matmul %6, %7, %cst {dimension_numbers = #tpu.dot_dimension_numbers<[1], [0], [0], [1], [0, 0, 1, 1], [], []>} : vector<16x16xbf16>, vector<16x192xbf16>, vector<16x192xf32> -> vector<16x192xf32>
    %9 = vector.extract_strided_slice %8 {offsets = [0, 0], sizes = [16, 16], strides = [1, 1]} : vector<16x192xf32> to vector<16x16xf32>
    %10 = vector.shape_cast %9 : vector<16x16xf32> to vector<2x8x16xf32>
    %11 = vector.extract_strided_slice %8 {offsets = [0, 16], sizes = [16, 16], strides = [1, 1]} : vector<16x192xf32> to vector<16x16xf32>
    %12 = vector.shape_cast %11 : vector<16x16xf32> to vector<2x8x16xf32>
    %13 = vector.extract_strided_slice %8 {offsets = [0, 32], sizes = [16, 16], strides = [1, 1]} : vector<16x192xf32> to vector<16x16xf32>
    %14 = vector.shape_cast %13 : vector<16x16xf32> to vector<2x8x16xf32>
    %15 = vector.extract_strided_slice %8 {offsets = [0, 48], sizes = [16, 16], strides = [1, 1]} : vector<16x192xf32> to vector<16x16xf32>
    %16 = vector.shape_cast %15 : vector<16x16xf32> to vector<2x8x16xf32>
    %17 = tpu.concatenate %10, %12, %14, %16 in 0 : vector<2x8x16xf32>, vector<2x8x16xf32>, vector<2x8x16xf32>, vector<2x8x16xf32> -> vector<8x8x16xf32>
    %18 = arith.truncf %17 : vector<8x8x16xf32> to vector<8x8x16xbf16>
    %19 = vector.extract_strided_slice %8 {offsets = [0, 64], sizes = [16, 16], strides = [1, 1]} : vector<16x192xf32> to vector<16x16xf32>
    %20 = vector.shape_cast %19 : vector<16x16xf32> to vector<2x8x16xf32>
    %21 = vector.extract_strided_slice %8 {offsets = [0, 80], sizes = [16, 16], strides = [1, 1]} : vector<16x192xf32> to vector<16x16xf32>
    %22 = vector.shape_cast %21 : vector<16x16xf32> to vector<2x8x16xf32>
    %23 = vector.extract_strided_slice %8 {offsets = [0, 96], sizes = [16, 16], strides = [1, 1]} : vector<16x192xf32> to vector<16x16xf32>
    %24 = vector.shape_cast %23 : vector<16x16xf32> to vector<2x8x16xf32>
    %25 = vector.extract_strided_slice %8 {offsets = [0, 112], sizes = [16, 16], strides = [1, 1]} : vector<16x192xf32> to vector<16x16xf32>
    %26 = vector.shape_cast %25 : vector<16x16xf32> to vector<2x8x16xf32>
    %27 = tpu.concatenate %20, %22, %24, %26 in 0 : vector<2x8x16xf32>, vector<2x8x16xf32>, vector<2x8x16xf32>, vector<2x8x16xf32> -> vector<8x8x16xf32>
    %28 = arith.truncf %27 : vector<8x8x16xf32> to vector<8x8x16xbf16>
    %29 = vector.extract_strided_slice %8 {offsets = [0, 128], sizes = [16, 16], strides = [1, 1]} : vector<16x192xf32> to vector<16x16xf32>
    %30 = vector.shape_cast %29 : vector<16x16xf32> to vector<2x8x16xf32>
    %31 = vector.extract_strided_slice %8 {offsets = [0, 144], sizes = [16, 16], strides = [1, 1]} : vector<16x192xf32> to vector<16x16xf32>
    %32 = vector.shape_cast %31 : vector<16x16xf32> to vector<2x8x16xf32>
    %33 = vector.extract_strided_slice %8 {offsets = [0, 160], sizes = [16, 16], strides = [1, 1]} : vector<16x192xf32> to vector<16x16xf32>
    %34 = vector.shape_cast %33 : vector<16x16xf32> to vector<2x8x16xf32>
    %35 = vector.extract_strided_slice %8 {offsets = [0, 176], sizes = [16, 16], strides = [1, 1]} : vector<16x192xf32> to vector<16x16xf32>
    %36 = vector.shape_cast %35 : vector<16x16xf32> to vector<2x8x16xf32>
    %37 = tpu.concatenate %30, %32, %34, %36 in 0 : vector<2x8x16xf32>, vector<2x8x16xf32>, vector<2x8x16xf32>, vector<2x8x16xf32> -> vector<8x8x16xf32>
    %38 = arith.truncf %37 : vector<8x8x16xf32> to vector<8x8x16xbf16>
    "tpu.trace_start"() <{level = 10 : i32, message = "gne,gme->gnm"}> : () -> ()
    %cst_9 = arith.constant dense<0.000000e+00> : vector<8x8x8xf32>
    %39 = tpu.matmul %18, %28, %cst_9 {dimension_numbers = #tpu.dot_dimension_numbers<[2], [2], [1], [1], [0, 0, 0, 1, 1, 1], [0], [0]>} : vector<8x8x16xbf16>, vector<8x8x16xbf16>, vector<8x8x8xf32> -> vector<8x8x8xf32>
    "tpu.trace_stop"() : () -> ()
    %cst_10 = arith.constant dense<0xFF800000> : vector<8x8xf32>
    %40 = vector.multi_reduction <maximumf>, %39, %cst_10 [2] : vector<8x8x8xf32> to vector<8x8xf32>
    %41 = vector.shape_cast %40 : vector<8x8xf32> to vector<8x8x1xf32>
    %42 = vector.broadcast %41 : vector<8x8x1xf32> to vector<8x8x8xf32>
    %43 = arith.subf %39, %42 : vector<8x8x8xf32>
    %44 = math.exp %43 : vector<8x8x8xf32>
    %cst_11 = arith.constant dense<0.000000e+00> : vector<8x8xf32>
    %45 = vector.multi_reduction <add>, %44, %cst_11 [2] : vector<8x8x8xf32> to vector<8x8xf32>
    %46 = vector.shape_cast %45 : vector<8x8xf32> to vector<8x8x1xf32>
    %47 = tpu.reciprocal %46 {approx = true} : vector<8x8x1xf32> -> vector<8x8x1xf32>
    %48 = vector.broadcast %47 : vector<8x8x1xf32> to vector<8x8x8xf32>
    %49 = arith.mulf %44, %48 : vector<8x8x8xf32>
    %50 = arith.truncf %49 : vector<8x8x8xf32> to vector<8x8x8xbf16>
    "tpu.trace_start"() <{level = 10 : i32, message = "gnm,gme->gne"}> : () -> ()
    %cst_12 = arith.constant dense<0.000000e+00> : vector<8x8x16xf32>
    %51 = tpu.matmul %50, %38, %cst_12 {dimension_numbers = #tpu.dot_dimension_numbers<[2], [1], [1], [2], [0, 0, 0, 1, 1, 2], [0], [0]>} : vector<8x8x8xbf16>, vector<8x8x16xbf16>, vector<8x8x16xf32> -> vector<8x8x16xf32>
    "tpu.trace_stop"() : () -> ()
    %52 = vector.extract_strided_slice %51 {offsets = [0, 0, 0], sizes = [2, 8, 16], strides = [1, 1, 1]} : vector<8x8x16xf32> to vector<2x8x16xf32>
    %53 = vector.shape_cast %52 : vector<2x8x16xf32> to vector<16x16xf32>
    %54 = vector.extract_strided_slice %51 {offsets = [2, 0, 0], sizes = [2, 8, 16], strides = [1, 1, 1]} : vector<8x8x16xf32> to vector<2x8x16xf32>
    %55 = vector.shape_cast %54 : vector<2x8x16xf32> to vector<16x16xf32>
    %56 = vector.extract_strided_slice %51 {offsets = [4, 0, 0], sizes = [2, 8, 16], strides = [1, 1, 1]} : vector<8x8x16xf32> to vector<2x8x16xf32>
    %57 = vector.shape_cast %56 : vector<2x8x16xf32> to vector<16x16xf32>
    %58 = vector.extract_strided_slice %51 {offsets = [6, 0, 0], sizes = [2, 8, 16], strides = [1, 1, 1]} : vector<8x8x16xf32> to vector<2x8x16xf32>
    %59 = vector.shape_cast %58 : vector<2x8x16xf32> to vector<16x16xf32>
    %60 = tpu.concatenate %53, %55, %57, %59 in 1 : vector<16x16xf32>, vector<16x16xf32>, vector<16x16xf32>, vector<16x16xf32> -> vector<16x64xf32>
    %61 = arith.truncf %60 : vector<16x64xf32> to vector<16x64xbf16>
    %c0_13 = arith.constant 0 : index
    %c0_14 = arith.constant 0 : index
    %62 = vector.load %arg2[%c0_13, %c0_14] : memref<128x16xbf16, #tpu.memory_space<vmem>>, vector<64x16xbf16>
    %cst_15 = arith.constant dense<0.000000e+00> : vector<16x16xf32>
    %63 = tpu.matmul %61, %62, %cst_15 {dimension_numbers = #tpu.dot_dimension_numbers<[1], [0], [0], [1], [0, 0, 1, 1], [], []>} : vector<16x64xbf16>, vector<64x16xbf16>, vector<16x16xf32> -> vector<16x16xf32>
    %64 = vector.broadcast %1 : vector<1x16xf32> to vector<16x16xf32>
    %65 = arith.addf %63, %64 : vector<16x16xf32>
    %66 = arith.addf %65, %0 : vector<16x16xf32>
    %cst_16 = arith.constant dense<0.000000e+00> : vector<16xf32>
    %67 = vector.multi_reduction <add>, %66, %cst_16 [1] : vector<16x16xf32> to vector<16xf32>
    %68 = vector.shape_cast %67 : vector<16xf32> to vector<16x1xf32>
    %cst_17 = arith.constant 1.600000e+01 : f32
    %69 = vector.broadcast %cst_17 : f32 to vector<16x1xf32>
    %70 = arith.divf %68, %69 : vector<16x1xf32>
    %71 = vector.broadcast %70 : vector<16x1xf32> to vector<16x16xf32>
    %72 = arith.subf %66, %71 : vector<16x16xf32>
    %73 = vector.broadcast %70 : vector<16x1xf32> to vector<16x16xf32>
    %74 = arith.subf %66, %73 : vector<16x16xf32>
    %75 = arith.mulf %72, %74 : vector<16x16xf32>
    %cst_18 = arith.constant dense<0.000000e+00> : vector<16xf32>
    %76 = vector.multi_reduction <add>, %75, %cst_18 [1] : vector<16x16xf32> to vector<16xf32>
    %77 = vector.shape_cast %76 : vector<16xf32> to vector<16x1xf32>
    %cst_19 = arith.constant 1.600000e+01 : f32
    %78 = vector.broadcast %cst_19 : f32 to vector<16x1xf32>
    %79 = arith.divf %77, %78 : vector<16x1xf32>
    %80 = vector.broadcast %70 : vector<16x1xf32> to vector<16x16xf32>
    %81 = arith.subf %66, %80 : vector<16x16xf32>
    %cst_20 = arith.constant 9.99999974E-6 : f32
    %82 = vector.broadcast %cst_20 : f32 to vector<16x1xf32>
    %83 = arith.addf %79, %82 : vector<16x1xf32>
    %84 = math.rsqrt %83 : vector<16x1xf32>
    %85 = vector.broadcast %84 : vector<16x1xf32> to vector<16x16xf32>
    %86 = arith.mulf %81, %85 : vector<16x16xf32>
    %87 = vector.broadcast %2 : vector<1x16xf32> to vector<16x16xf32>
    %88 = arith.mulf %86, %87 : vector<16x16xf32>
    %89 = vector.broadcast %3 : vector<1x16xf32> to vector<16x16xf32>
    %90 = arith.addf %88, %89 : vector<16x16xf32>
    %91 = arith.truncf %65 : vector<16x16xf32> to vector<16x16xbf16>
    %c0_21 = arith.constant 0 : index
    %c192 = arith.constant 192 : index
    %92 = vector.load %arg1[%c0_21, %c192] : memref<16x320xbf16, #tpu.memory_space<vmem>>, vector<16x128xbf16>
    %cst_22 = arith.constant dense<0.000000e+00> : vector<16x128xf32>
    %93 = tpu.matmul %91, %92, %cst_22 {dimension_numbers = #tpu.dot_dimension_numbers<[1], [0], [0], [1], [0, 0, 1, 1], [], []>} : vector<16x16xbf16>, vector<16x128xbf16>, vector<16x128xf32> -> vector<16x128xf32>
    %94 = vector.extract_strided_slice %93 {offsets = [0, 0], sizes = [16, 64], strides = [1, 1]} : vector<16x128xf32> to vector<16x64xf32>
    %cst_23 = arith.constant 5.000000e-01 : f32
    %95 = vector.broadcast %cst_23 : f32 to vector<16x64xf32>
    %96 = arith.mulf %95, %94 : vector<16x64xf32>
    %cst_24 = arith.constant 2.000000e+00 : f32
    %97 = math.sqrt %cst_24 : f32
    %98 = vector.broadcast %97 : f32 to vector<16x64xf32>
    %99 = arith.divf %94, %98 : vector<16x64xf32>
    %100 = math.erf %99 : vector<16x64xf32>
    %cst_25 = arith.constant 1.000000e+00 : f32
    %101 = vector.broadcast %cst_25 : f32 to vector<16x64xf32>
    %102 = arith.addf %101, %100 : vector<16x64xf32>
    %103 = arith.mulf %96, %102 : vector<16x64xf32>
    %104 = vector.extract_strided_slice %93 {offsets = [0, 64], sizes = [16, 64], strides = [1, 1]} : vector<16x128xf32> to vector<16x64xf32>
    %105 = arith.mulf %103, %104 : vector<16x64xf32>
    %106 = arith.truncf %105 : vector<16x64xf32> to vector<16x64xbf16>
    %c64 = arith.constant 64 : index
    %c0_26 = arith.constant 0 : index
    %107 = vector.load %arg2[%c64, %c0_26] : memref<128x16xbf16, #tpu.memory_space<vmem>>, vector<64x16xbf16>
    %cst_27 = arith.constant dense<0.000000e+00> : vector<16x16xf32>
    %108 = tpu.matmul %106, %107, %cst_27 {dimension_numbers = #tpu.dot_dimension_numbers<[1], [0], [0], [1], [0, 0, 1, 1], [], []>} : vector<16x64xbf16>, vector<64x16xbf16>, vector<16x16xf32> -> vector<16x16xf32>
    %109 = arith.addf %108, %90 : vector<16x16xf32>
    %cst_28 = arith.constant dense<0.000000e+00> : vector<16xf32>
    %110 = vector.multi_reduction <add>, %109, %cst_28 [1] : vector<16x16xf32> to vector<16xf32>
    %111 = vector.shape_cast %110 : vector<16xf32> to vector<16x1xf32>
    %cst_29 = arith.constant 1.600000e+01 : f32
    %112 = vector.broadcast %cst_29 : f32 to vector<16x1xf32>
    %113 = arith.divf %111, %112 : vector<16x1xf32>
    %114 = vector.broadcast %113 : vector<16x1xf32> to vector<16x16xf32>
    %115 = arith.subf %109, %114 : vector<16x16xf32>
    %116 = vector.broadcast %113 : vector<16x1xf32> to vector<16x16xf32>
    %117 = arith.subf %109, %116 : vector<16x16xf32>
    %118 = arith.mulf %115, %117 : vector<16x16xf32>
    %cst_30 = arith.constant dense<0.000000e+00> : vector<16xf32>
    %119 = vector.multi_reduction <add>, %118, %cst_30 [1] : vector<16x16xf32> to vector<16xf32>
    %120 = vector.shape_cast %119 : vector<16xf32> to vector<16x1xf32>
    %cst_31 = arith.constant 1.600000e+01 : f32
    %121 = vector.broadcast %cst_31 : f32 to vector<16x1xf32>
    %122 = arith.divf %120, %121 : vector<16x1xf32>
    %123 = vector.broadcast %113 : vector<16x1xf32> to vector<16x16xf32>
    %124 = arith.subf %109, %123 : vector<16x16xf32>
    %cst_32 = arith.constant 9.99999974E-6 : f32
    %125 = vector.broadcast %cst_32 : f32 to vector<16x1xf32>
    %126 = arith.addf %122, %125 : vector<16x1xf32>
    %127 = math.rsqrt %126 : vector<16x1xf32>
    %128 = vector.broadcast %127 : vector<16x1xf32> to vector<16x16xf32>
    %129 = arith.mulf %124, %128 : vector<16x16xf32>
    %130 = vector.broadcast %4 : vector<1x16xf32> to vector<16x16xf32>
    %131 = arith.mulf %129, %130 : vector<16x16xf32>
    %132 = vector.broadcast %5 : vector<1x16xf32> to vector<16x16xf32>
    %133 = arith.addf %131, %132 : vector<16x16xf32>
    %c0_33 = arith.constant 0 : index
    %c0_34 = arith.constant 0 : index
    %134 = vector.load %arg4[%c0_33, %c0_34] : memref<16x16xf32, #tpu.memory_space<vmem>>, vector<16x16xf32>
    tpu.vector_store %arg4[%c0_33, %c0_34], %133 {strides = array<i32>} : memref<16x16xf32, #tpu.memory_space<vmem>>, vector<16x16xf32>,
    return
  }
}

</mosaic_0001>

<llo_original>
// kernel: transformer_encoder_block.1
$region0: #{transformer_encoder_block.1}
  #allocation0 [shape = 'u32[]', space=smem, size = 0x4, offset = 0x4, fixed_abs, tag = 'smem constant byte address 0x4 - core index']
  #allocation1 [shape = 'u32[72,128]{1,0:T(1,128)}', space=vmem, size = 0x9000, scoped, tag = 'internal scratch']
  %s0 = inlined_call_operand.vmem [shape: f32[16,16], index: 0, kind: input, shape index: {}]
  %s1 = inlined_call_operand.vmem [shape: bf16[16,320], index: 1, kind: input, shape index: {}]
  %s2 = inlined_call_operand.vmem [shape: bf16[128,16], index: 2, kind: input, shape index: {}]
  %s3 = inlined_call_operand.vmem [shape: f32[5,16], index: 3, kind: input, shape index: {}]
  %s4 = inlined_call_operand.hbm [shape: f32[16,16], index: 4, kind: output, shape index: {}]
  %s5 = sld [smem:[#allocation0]]
  $region26: #{transformer_encoder_block.1} parent=0
    _
  %s7 = ssub.s32 1, %s5
  %s8 = scalar_select 0, %s7, %s5
  $region1: #{transformer_encoder_block.1} parent=0
    #allocation2 [shape = 'u8[8192]{0}', space=vmem, size = 0x2000, scoped, tag = 'output window, operand 0, single buffered']
    #allocation3 [shape = 's32[1]{0}', space=sflag, size = 0x4, scoped, tag = 'scoped memory for transformer_encoder_block.1']
    %9 = vsyncpa [#allocation3], 0
    // Predicated region
    $region2: #{transformer_encoder_block.1} parent=1 // pred_check
      _
    $region3: #{transformer_encoder_block.1} parent=1 // pred_check_branch
      %11 = sbr.rel (0) target = $region5
    $region4: #{transformer_encoder_block.1} parent=1 // pred_region
      _
    $region5: #{transformer_encoder_block.1} parent=1 // pred_fallthru
      _
    // Predicated region
    $region6: #{transformer_encoder_block.1} parent=1 // pred_check
      _
    $region7: #{transformer_encoder_block.1} parent=1 // pred_check_branch
      %13 = sbr.rel (0) target = $region9
    $region8: #{transformer_encoder_block.1} parent=1 // pred_region
      _
    $region9: #{transformer_encoder_block.1} parent=1 // pred_fallthru
      _
    // Predicated region
    $region10: #{transformer_encoder_block.1} parent=1 // pred_check
      _
    $region11: #{transformer_encoder_block.1} parent=1 // pred_check_branch
      %15 = sbr.rel (0) target = $region13
    $region12: #{transformer_encoder_block.1} parent=1 // pred_region
      _
    $region13: #{transformer_encoder_block.1} parent=1 // pred_fallthru
      _
    // Predicated region
    $region14: #{transformer_encoder_block.1} parent=1 // pred_check
      _
    $region15: #{transformer_encoder_block.1} parent=1 // pred_check_branch
      %17 = sbr.rel (0) target = $region17
    $region16: #{transformer_encoder_block.1} parent=1 // pred_region
      _
    $region17: #{transformer_encoder_block.1} parent=1 // pred_fallthru
      _
    %v19 = vld [vmem:[%s0] sm:$0xff]
    %v20 = vld [vmem:[%s0 + $0x8] sm:$0xff]
    %v21 = vld [vmem:[%s3] sm:$0x1]
    %v22 = vld [vmem:[%s3 + $0x1] sm:$0x1]
    %v23 = vld [vmem:[%s3 + $0x2] sm:$0x1]
    %v24 = vld [vmem:[%s3 + $0x3] sm:$0x1]
    %v25 = vld [vmem:[%s3 + $0x4] sm:$0x1]
    %v26 = vpack.c.bf16 %v20, %v19
    %v27 = vld [vmem:[%s1] sm:$0xff]
    %v28 = vld [vmem:[%s1 + $0xc] sm:$0xff]
    %v31 = vunpack.c.l.b16 %v27
    %v32 = vunpack.c.h.b16 %v27
    %v33 = vunpack.c.l.b16 %v28
    %v34 = vunpack.c.h.b16 %v28
    %v35 = vpack.c.b16 %v33, %v31
    %v36 = vpack.c.b16 %v34, %v32
    %vm39 = vcmask 130048
    %v41 = vsel %vm39, %v26, 0
    %43 = vmatpush.bf16.msra.mxu0 0
    %44 = vmatpush.bf16.msra.mxu0 0
    %45 = vmatpush.bf16.msra.mxu0 0
    %46 = vmatpush.bf16.msra.mxu0 0
    %47 = vmatpush.bf16.msra.mxu0 0
    %48 = vmatpush.bf16.msra.mxu0 0
    %49 = vmatpush.bf16.msra.mxu0 0
    %50 = vmatpush.bf16.msra.mxu0 %v35
    %51 = vmatmul.bf16.gmra.mxu0 %v41
    %v52 = vpop.f32.mrf.mxu0
    %v53 = vadd.f32 0.0, %v52
    %v54 = vpop.f32.mrf.mxu0
    %v55 = vadd.f32 0.0, %v54
    %56 = vdwg.mxu0
    %57 = vmatpush.bf16.msra.mxu0 0
    %58 = vmatpush.bf16.msra.mxu0 0
    %59 = vmatpush.bf16.msra.mxu0 0
    %60 = vmatpush.bf16.msra.mxu0 0
    %61 = vmatpush.bf16.msra.mxu0 0
    %62 = vmatpush.bf16.msra.mxu0 0
    %63 = vmatpush.bf16.msra.mxu0 0
    %64 = vmatpush.bf16.msra.mxu0 %v36
    %65 = vmatmul.bf16.gmra.mxu0 %v41
    %v66 = vpop.f32.mrf.mxu0
    %v67 = vadd.f32 0.0, %v66
    %v68 = vpop.f32.mrf.mxu0
    %v69 = vadd.f32 0.0, %v68
    %70 = vdwg.mxu0
    %73 = vrot.lane.b32.xlu0 %v53, 112
    %v74 = vpop.permute.xlu0 %73
    %75 = vrot.lane.b32.xlu0 %v55, 112
    %v76 = vpop.permute.xlu0 %75
    %79 = vrot.lane.b32.xlu0 %v53, 96
    %v80 = vpop.permute.xlu0 %79
    %81 = vrot.lane.b32.xlu0 %v55, 96
    %v82 = vpop.permute.xlu0 %81
    %85 = vrot.lane.b32.xlu0 %v53, 80
    %v86 = vpop.permute.xlu0 %85
    %87 = vrot.lane.b32.xlu0 %v55, 80
    %v88 = vpop.permute.xlu0 %87
    %v91 = vpack.c.bf16 %v53, %v53
    %v92 = vpack.c.bf16 %v55, %v55
    %v93 = vpack.c.bf16 %v74, %v74
    %v94 = vpack.c.bf16 %v76, %v76
    %v95 = vpack.c.bf16 %v80, %v80
    %v96 = vpack.c.bf16 %v82, %v82
    %v97 = vpack.c.bf16 %v86, %v86
    %v98 = vpack.c.bf16 %v88, %v88
    %101 = vrot.lane.b32.xlu0 %v67, 112
    %v102 = vpop.permute.xlu0 %101
    %103 = vrot.lane.b32.xlu0 %v69, 112
    %v104 = vpop.permute.xlu0 %103
    %107 = vrot.lane.b32.xlu0 %v67, 96
    %v108 = vpop.permute.xlu0 %107
    %109 = vrot.lane.b32.xlu0 %v69, 96
    %v110 = vpop.permute.xlu0 %109
    %113 = vrot.lane.b32.xlu0 %v67, 80
    %v114 = vpop.permute.xlu0 %113
    %115 = vrot.lane.b32.xlu0 %v69, 80
    %v116 = vpop.permute.xlu0 %115
    %v119 = vpack.c.bf16 %v67, %v67
    %v120 = vpack.c.bf16 %v69, %v69
    %v121 = vpack.c.bf16 %v102, %v102
    %v122 = vpack.c.bf16 %v104, %v104
    %v123 = vpack.c.bf16 %v108, %v108
    %v124 = vpack.c.bf16 %v110, %v110
    %v125 = vpack.c.bf16 %v114, %v114
    %v126 = vpack.c.bf16 %v116, %v116
    %v128 = vunpack.c.l.b16 %v91
    %v129 = vpack.c.b16 %v128, %v128
    %130 = vrot.lane.b32.xlu0 %v129, 64
    %v131 = vpop.permute.xlu0 %130
    %v133 = vsel %vm39, %v91, 0
    %v136 = vsel %vm39, %v131, 0
    %138 = vmatpush.bf16.xpose.msra.mxu0 0
    %139 = vmatpush.bf16.xpose.msra.mxu0 0
    %140 = vmatpush.bf16.xpose.msra.mxu0 0
    %141 = vmatpush.bf16.xpose.msra.mxu0 0
    %142 = vmatpush.bf16.xpose.msra.mxu0 0
    %143 = vmatpush.bf16.xpose.msra.mxu0 0
    %144 = vmatpush.bf16.xpose.msra.mxu0 0
    %145 = vmatpush.bf16.xpose.msra.mxu0 %v136
    %146 = vmatmul.bf16.gmra.mxu0 %v133
    %v147 = vpop.f32.mrf.mxu0
    %v148 = vadd.f32 0.0, %v147
    %v149 = vpop.f32.mrf.mxu0
    %150 = vdwg.mxu0
    %v152 = vunpack.c.l.b16 %v92
    %v153 = vpack.c.b16 %v152, %v152
    %154 = vrot.lane.b32.xlu0 %v153, 64
    %v155 = vpop.permute.xlu0 %154
    %v157 = vsel %vm39, %v92, 0
    %v160 = vsel %vm39, %v155, 0
    %162 = vmatpush.bf16.xpose.msra.mxu0 0
    %163 = vmatpush.bf16.xpose.msra.mxu0 0
    %164 = vmatpush.bf16.xpose.msra.mxu0 0
    %165 = vmatpush.bf16.xpose.msra.mxu0 0
    %166 = vmatpush.bf16.xpose.msra.mxu0 0
    %167 = vmatpush.bf16.xpose.msra.mxu0 0
    %168 = vmatpush.bf16.xpose.msra.mxu0 0
    %169 = vmatpush.bf16.xpose.msra.mxu0 %v160
    %170 = vmatmul.bf16.gmra.mxu0 %v157
    %v171 = vpop.f32.mrf.mxu0
    %v172 = vadd.f32 0.0, %v171
    %v173 = vpop.f32.mrf.mxu0
    %174 = vdwg.mxu0
    %v176 = vunpack.c.l.b16 %v93
    %v177 = vpack.c.b16 %v176, %v176
    %178 = vrot.lane.b32.xlu0 %v177, 64
    %v179 = vpop.permute.xlu0 %178
    %v181 = vsel %vm39, %v93, 0
    %v184 = vsel %vm39, %v179, 0
    %186 = vmatpush.bf16.xpose.msra.mxu0 0
    %187 = vmatpush.bf16.xpose.msra.mxu0 0
    %188 = vmatpush.bf16.xpose.msra.mxu0 0
    %189 = vmatpush.bf16.xpose.msra.mxu0 0
    %190 = vmatpush.bf16.xpose.msra.mxu0 0
    %191 = vmatpush.bf16.xpose.msra.mxu0 0
    %192 = vmatpush.bf16.xpose.msra.mxu0 0
    %193 = vmatpush.bf16.xpose.msra.mxu0 %v184
    %194 = vmatmul.bf16.gmra.mxu0 %v181
    %v195 = vpop.f32.mrf.mxu0
    %v196 = vadd.f32 0.0, %v195
    %v197 = vpop.f32.mrf.mxu0
    %198 = vdwg.mxu0
    %v200 = vunpack.c.l.b16 %v94
    %v201 = vpack.c.b16 %v200, %v200
    %202 = vrot.lane.b32.xlu0 %v201, 64
    %v203 = vpop.permute.xlu0 %202
    %v205 = vsel %vm39, %v94, 0
    %v208 = vsel %vm39, %v203, 0
    %210 = vmatpush.bf16.xpose.msra.mxu0 0
    %211 = vmatpush.bf16.xpose.msra.mxu0 0
    %212 = vmatpush.bf16.xpose.msra.mxu0 0
    %213 = vmatpush.bf16.xpose.msra.mxu0 0
    %214 = vmatpush.bf16.xpose.msra.mxu0 0
    %215 = vmatpush.bf16.xpose.msra.mxu0 0
    %216 = vmatpush.bf16.xpose.msra.mxu0 0
    %217 = vmatpush.bf16.xpose.msra.mxu0 %v208
    %218 = vmatmul.bf16.gmra.mxu0 %v205
    %v219 = vpop.f32.mrf.mxu0
    %v220 = vadd.f32 0.0, %v219
    %v221 = vpop.f32.mrf.mxu0
    %222 = vdwg.mxu0
    %v224 = vunpack.c.l.b16 %v95
    %v225 = vpack.c.b16 %v224, %v224
    %226 = vrot.lane.b32.xlu0 %v225, 64
    %v227 = vpop.permute.xlu0 %226
    %v229 = vsel %vm39, %v95, 0
    %v232 = vsel %vm39, %v227, 0
    %234 = vmatpush.bf16.xpose.msra.mxu0 0
    %235 = vmatpush.bf16.xpose.msra.mxu0 0
    %236 = vmatpush.bf16.xpose.msra.mxu0 0
    %237 = vmatpush.bf16.xpose.msra.mxu0 0
    %238 = vmatpush.bf16.xpose.msra.mxu0 0
    %239 = vmatpush.bf16.xpose.msra.mxu0 0
    %240 = vmatpush.bf16.xpose.msra.mxu0 0
    %241 = vmatpush.bf16.xpose.msra.mxu0 %v232
    %242 = vmatmul.bf16.gmra.mxu0 %v229
    %v243 = vpop.f32.mrf.mxu0
    %v244 = vadd.f32 0.0, %v243
    %v245 = vpop.f32.mrf.mxu0
    %246 = vdwg.mxu0
    %v248 = vunpack.c.l.b16 %v96
    %v249 = vpack.c.b16 %v248, %v248
    %250 = vrot.lane.b32.xlu0 %v249, 64
    %v251 = vpop.permute.xlu0 %250
    %v253 = vsel %vm39, %v96, 0
    %v256 = vsel %vm39, %v251, 0
    %258 = vmatpush.bf16.xpose.msra.mxu0 0
    %259 = vmatpush.bf16.xpose.msra.mxu0 0
    %260 = vmatpush.bf16.xpose.msra.mxu0 0
    %261 = vmatpush.bf16.xpose.msra.mxu0 0
    %262 = vmatpush.bf16.xpose.msra.mxu0 0
    %263 = vmatpush.bf16.xpose.msra.mxu0 0
    %264 = vmatpush.bf16.xpose.msra.mxu0 0
    %265 = vmatpush.bf16.xpose.msra.mxu0 %v256
    %266 = vmatmul.bf16.gmra.mxu0 %v253
    %v267 = vpop.f32.mrf.mxu0
    %v268 = vadd.f32 0.0, %v267
    %v269 = vpop.f32.mrf.mxu0
    %270 = vdwg.mxu0
    %v272 = vunpack.c.l.b16 %v97
    %v273 = vpack.c.b16 %v272, %v272
    %274 = vrot.lane.b32.xlu0 %v273, 64
    %v275 = vpop.permute.xlu0 %274
    %v277 = vsel %vm39, %v97, 0
    %v280 = vsel %vm39, %v275, 0
    %282 = vmatpush.bf16.xpose.msra.mxu0 0
    %283 = vmatpush.bf16.xpose.msra.mxu0 0
    %284 = vmatpush.bf16.xpose.msra.mxu0 0
    %285 = vmatpush.bf16.xpose.msra.mxu0 0
    %286 = vmatpush.bf16.xpose.msra.mxu0 0
    %287 = vmatpush.bf16.xpose.msra.mxu0 0
    %288 = vmatpush.bf16.xpose.msra.mxu0 0
    %289 = vmatpush.bf16.xpose.msra.mxu0 %v280
    %290 = vmatmul.bf16.gmra.mxu0 %v277
    %v291 = vpop.f32.mrf.mxu0
    %v292 = vadd.f32 0.0, %v291
    %v293 = vpop.f32.mrf.mxu0
    %294 = vdwg.mxu0
    %v296 = vunpack.c.l.b16 %v98
    %v297 = vpack.c.b16 %v296, %v296
    %298 = vrot.lane.b32.xlu0 %v297, 64
    %v299 = vpop.permute.xlu0 %298
    %v301 = vsel %vm39, %v98, 0
    %v304 = vsel %vm39, %v299, 0
    %306 = vmatpush.bf16.xpose.msra.mxu0 0
    %307 = vmatpush.bf16.xpose.msra.mxu0 0
    %308 = vmatpush.bf16.xpose.msra.mxu0 0
    %309 = vmatpush.bf16.xpose.msra.mxu0 0
    %310 = vmatpush.bf16.xpose.msra.mxu0 0
    %311 = vmatpush.bf16.xpose.msra.mxu0 0
    %312 = vmatpush.bf16.xpose.msra.mxu0 0
    %313 = vmatpush.bf16.xpose.msra.mxu0 %v304
    %314 = vmatmul.bf16.gmra.mxu0 %v301
    %v315 = vpop.f32.mrf.mxu0
    %v316 = vadd.f32 0.0, %v315
    %v317 = vpop.f32.mrf.mxu0
    %318 = vdwg.mxu0
    %vm319 = vcmask 64512
    %v320 = vsel %vm319, %v148, -inf
    %321 = vmax.xlane.f32.xlu0 %v320
    %v322 = vpop.xlane.xlu0 %321
    %v323 = vsel %vm319, %v172, -inf
    %324 = vmax.xlane.f32.xlu0 %v323
    %v325 = vpop.xlane.xlu0 %324
    %v326 = vsel %vm319, %v196, -inf
    %327 = vmax.xlane.f32.xlu0 %v326
    %v328 = vpop.xlane.xlu0 %327
    %v329 = vsel %vm319, %v220, -inf
    %330 = vmax.xlane.f32.xlu0 %v329
    %v331 = vpop.xlane.xlu0 %330
    %v332 = vsel %vm319, %v244, -inf
    %333 = vmax.xlane.f32.xlu0 %v332
    %v334 = vpop.xlane.xlu0 %333
    %v335 = vsel %vm319, %v268, -inf
    %336 = vmax.xlane.f32.xlu0 %v335
    %v337 = vpop.xlane.xlu0 %336
    %v338 = vsel %vm319, %v292, -inf
    %339 = vmax.xlane.f32.xlu0 %v338
    %v340 = vpop.xlane.xlu0 %339
    %v341 = vsel %vm319, %v316, -inf
    %342 = vmax.xlane.f32.xlu0 %v341
    %v343 = vpop.xlane.xlu0 %342
    %v344 = vsub.f32 %v148, %v322
    %v345 = vsub.f32 %v172, %v325
    %v346 = vsub.f32 %v196, %v328
    %v347 = vsub.f32 %v220, %v331
    %v348 = vsub.f32 %v244, %v334
    %v349 = vsub.f32 %v268, %v337
    %v350 = vsub.f32 %v292, %v340
    %v351 = vsub.f32 %v316, %v343
    %v352 = vmul.f32 %v344, 1.442695
    %v353 = vpow.pop %v352
    %v354 = vmul.f32 %v345, 1.442695
    %v355 = vpow.pop %v354
    %v356 = vmul.f32 %v346, 1.442695
    %v357 = vpow.pop %v356
    %v358 = vmul.f32 %v347, 1.442695
    %v359 = vpow.pop %v358
    %v360 = vmul.f32 %v348, 1.442695
    %v361 = vpow.pop %v360
    %v362 = vmul.f32 %v349, 1.442695
    %v363 = vpow.pop %v362
    %v364 = vmul.f32 %v350, 1.442695
    %v365 = vpow.pop %v364
    %v366 = vmul.f32 %v351, 1.442695
    %v367 = vpow.pop %v366
    %v368 = vsel %vm319, %v353, 0.0
    %369 = vadd.xlane.f32.xlu0 %v368
    %v370 = vpop.xlane.xlu0 %369
    %v371 = vsel %vm319, %v355, 0.0
    %372 = vadd.xlane.f32.xlu0 %v371
    %v373 = vpop.xlane.xlu0 %372
    %v374 = vsel %vm319, %v357, 0.0
    %375 = vadd.xlane.f32.xlu0 %v374
    %v376 = vpop.xlane.xlu0 %375
    %v377 = vsel %vm319, %v359, 0.0
    %378 = vadd.xlane.f32.xlu0 %v377
    %v379 = vpop.xlane.xlu0 %378
    %v380 = vsel %vm319, %v361, 0.0
    %381 = vadd.xlane.f32.xlu0 %v380
    %v382 = vpop.xlane.xlu0 %381
    %v383 = vsel %vm319, %v363, 0.0
    %384 = vadd.xlane.f32.xlu0 %v383
    %v385 = vpop.xlane.xlu0 %384
    %v386 = vsel %vm319, %v365, 0.0
    %387 = vadd.xlane.f32.xlu0 %v386
    %v388 = vpop.xlane.xlu0 %387
    %v389 = vsel %vm319, %v367, 0.0
    %390 = vadd.xlane.f32.xlu0 %v389
    %v391 = vpop.xlane.xlu0 %390
    %v392 = vrcp.pop %v370
    %v393 = vrcp.pop %v373
    %v394 = vrcp.pop %v376
    %v395 = vrcp.pop %v379
    %v396 = vrcp.pop %v382
    %v397 = vrcp.pop %v385
    %v398 = vrcp.pop %v388
    %v399 = vrcp.pop %v391
    %v400 = vmul.f32 %v353, %v392
    %v401 = vmul.f32 %v355, %v393
    %v402 = vmul.f32 %v357, %v394
    %v403 = vmul.f32 %v359, %v395
    %v404 = vmul.f32 %v361, %v396
    %v405 = vmul.f32 %v363, %v397
    %v406 = vmul.f32 %v365, %v398
    %v407 = vmul.f32 %v367, %v399
    %v408 = vpack.c.bf16 %v400, %v400
    %v409 = vpack.c.bf16 %v401, %v401
    %v410 = vpack.c.bf16 %v402, %v402
    %v411 = vpack.c.bf16 %v403, %v403
    %v412 = vpack.c.bf16 %v404, %v404
    %v413 = vpack.c.bf16 %v405, %v405
    %v414 = vpack.c.bf16 %v406, %v406
    %v415 = vpack.c.bf16 %v407, %v407
    %v417 = vsel %vm319, %v408, 0
    %vm419 = vcmask 1043456
    %v421 = vsel %vm419, %v119, 0
    %423 = vmatpush.bf16.msra.mxu0 0
    %424 = vmatpush.bf16.msra.mxu0 0
    %425 = vmatpush.bf16.msra.mxu0 0
    %426 = vmatpush.bf16.msra.mxu0 0
    %427 = vmatpush.bf16.msra.mxu0 0
    %428 = vmatpush.bf16.msra.mxu0 0
    %429 = vmatpush.bf16.msra.mxu0 0
    %430 = vmatpush.bf16.msra.mxu0 %v421
    %431 = vmatmul.bf16.gmra.mxu0 %v417
    %v432 = vpop.f32.mrf.mxu0
    %v433 = vadd.f32 0.0, %v432
    %v434 = vpop.f32.mrf.mxu0
    %435 = vdwg.mxu0
    %v437 = vsel %vm319, %v409, 0
    %v440 = vsel %vm419, %v120, 0
    %442 = vmatpush.bf16.msra.mxu0 0
    %443 = vmatpush.bf16.msra.mxu0 0
    %444 = vmatpush.bf16.msra.mxu0 0
    %445 = vmatpush.bf16.msra.mxu0 0
    %446 = vmatpush.bf16.msra.mxu0 0
    %447 = vmatpush.bf16.msra.mxu0 0
    %448 = vmatpush.bf16.msra.mxu0 0
    %449 = vmatpush.bf16.msra.mxu0 %v440
    %450 = vmatmul.bf16.gmra.mxu0 %v437
    %v451 = vpop.f32.mrf.mxu0
    %v452 = vadd.f32 0.0, %v451
    %v453 = vpop.f32.mrf.mxu0
    %454 = vdwg.mxu0
    %v456 = vsel %vm319, %v410, 0
    %v459 = vsel %vm419, %v121, 0
    %461 = vmatpush.bf16.msra.mxu0 0
    %462 = vmatpush.bf16.msra.mxu0 0
    %463 = vmatpush.bf16.msra.mxu0 0
    %464 = vmatpush.bf16.msra.mxu0 0
    %465 = vmatpush.bf16.msra.mxu0 0
    %466 = vmatpush.bf16.msra.mxu0 0
    %467 = vmatpush.bf16.msra.mxu0 0
    %468 = vmatpush.bf16.msra.mxu0 %v459
    %469 = vmatmul.bf16.gmra.mxu0 %v456
    %v470 = vpop.f32.mrf.mxu0
    %v471 = vadd.f32 0.0, %v470
    %v472 = vpop.f32.mrf.mxu0
    %473 = vdwg.mxu0
    %v475 = vsel %vm319, %v411, 0
    %v478 = vsel %vm419, %v122, 0
    %480 = vmatpush.bf16.msra.mxu0 0
    %481 = vmatpush.bf16.msra.mxu0 0
    %482 = vmatpush.bf16.msra.mxu0 0
    %483 = vmatpush.bf16.msra.mxu0 0
    %484 = vmatpush.bf16.msra.mxu0 0
    %485 = vmatpush.bf16.msra.mxu0 0
    %486 = vmatpush.bf16.msra.mxu0 0
    %487 = vmatpush.bf16.msra.mxu0 %v478
    %488 = vmatmul.bf16.gmra.mxu0 %v475
    %v489 = vpop.f32.mrf.mxu0
    %v490 = vadd.f32 0.0, %v489
    %v491 = vpop.f32.mrf.mxu0
    %492 = vdwg.mxu0
    %v494 = vsel %vm319, %v412, 0
    %v497 = vsel %vm419, %v123, 0
    %499 = vmatpush.bf16.msra.mxu0 0
    %500 = vmatpush.bf16.msra.mxu0 0
    %501 = vmatpush.bf16.msra.mxu0 0
    %502 = vmatpush.bf16.msra.mxu0 0
    %503 = vmatpush.bf16.msra.mxu0 0
    %504 = vmatpush.bf16.msra.mxu0 0
    %505 = vmatpush.bf16.msra.mxu0 0
    %506 = vmatpush.bf16.msra.mxu0 %v497
    %507 = vmatmul.bf16.gmra.mxu0 %v494
    %v508 = vpop.f32.mrf.mxu0
    %v509 = vadd.f32 0.0, %v508
    %v510 = vpop.f32.mrf.mxu0
    %511 = vdwg.mxu0
    %v513 = vsel %vm319, %v413, 0
    %v516 = vsel %vm419, %v124, 0
    %518 = vmatpush.bf16.msra.mxu0 0
    %519 = vmatpush.bf16.msra.mxu0 0
    %520 = vmatpush.bf16.msra.mxu0 0
    %521 = vmatpush.bf16.msra.mxu0 0
    %522 = vmatpush.bf16.msra.mxu0 0
    %523 = vmatpush.bf16.msra.mxu0 0
    %524 = vmatpush.bf16.msra.mxu0 0
    %525 = vmatpush.bf16.msra.mxu0 %v516
    %526 = vmatmul.bf16.gmra.mxu0 %v513
    %v527 = vpop.f32.mrf.mxu0
    %v528 = vadd.f32 0.0, %v527
    %v529 = vpop.f32.mrf.mxu0
    %530 = vdwg.mxu0
    %v532 = vsel %vm319, %v414, 0
    %v535 = vsel %vm419, %v125, 0
    %537 = vmatpush.bf16.msra.mxu0 0
    %538 = vmatpush.bf16.msra.mxu0 0
    %539 = vmatpush.bf16.msra.mxu0 0
    %540 = vmatpush.bf16.msra.mxu0 0
    %541 = vmatpush.bf16.msra.mxu0 0
    %542 = vmatpush.bf16.msra.mxu0 0
    %543 = vmatpush.bf16.msra.mxu0 0
    %544 = vmatpush.bf16.msra.mxu0 %v535
    %545 = vmatmul.bf16.gmra.mxu0 %v532
    %v546 = vpop.f32.mrf.mxu0
    %v547 = vadd.f32 0.0, %v546
    %v548 = vpop.f32.mrf.mxu0
    %549 = vdwg.mxu0
    %v551 = vsel %vm319, %v415, 0
    %v554 = vsel %vm419, %v126, 0
    %556 = vmatpush.bf16.msra.mxu0 0
    %557 = vmatpush.bf16.msra.mxu0 0
    %558 = vmatpush.bf16.msra.mxu0 0
    %559 = vmatpush.bf16.msra.mxu0 0
    %560 = vmatpush.bf16.msra.mxu0 0
    %561 = vmatpush.bf16.msra.mxu0 0
    %562 = vmatpush.bf16.msra.mxu0 0
    %563 = vmatpush.bf16.msra.mxu0 %v554
    %564 = vmatmul.bf16.gmra.mxu0 %v551
    %v565 = vpop.f32.mrf.mxu0
    %v566 = vadd.f32 0.0, %v565
    %v567 = vpop.f32.mrf.mxu0
    %568 = vdwg.mxu0
    %571 = vrot.lane.b32.xlu0 %v471, 16
    %v572 = vpop.permute.xlu0 %571
    %573 = vrot.lane.b32.xlu0 %v490, 16
    %v574 = vpop.permute.xlu0 %573
    %579 = vrot.lane.b32.xlu0 %v509, 32
    %v580 = vpop.permute.xlu0 %579
    %581 = vrot.lane.b32.xlu0 %v528, 32
    %v582 = vpop.permute.xlu0 %581
    %587 = vrot.lane.b32.xlu0 %v547, 48
    %v588 = vpop.permute.xlu0 %587
    %589 = vrot.lane.b32.xlu0 %v566, 48
    %v590 = vpop.permute.xlu0 %589
    %v593 = vsel %vm39, %v433, %v572
    %v594 = vsel %vm39, %v452, %v574
    %vm595 = vcmask 261120
    %v596 = vsel %vm595, %v593, %v580
    %v597 = vsel %vm595, %v594, %v582
    %vm598 = vcmask 392192
    %v599 = vsel %vm598, %v596, %v588
    %v600 = vsel %vm598, %v597, %v590
    %v601 = vpack.c.bf16 %v600, %v599
    %v602 = vld [vmem:[%s2] sm:$0xf]
    %v603 = vld [vmem:[%s2 + $0x4] sm:$0xf]
    %v604 = vld [vmem:[%s2 + $0x8] sm:$0xf]
    %v605 = vld [vmem:[%s2 + $0xc] sm:$0xf]
    %v606 = vld [vmem:[%s2 + $0x10] sm:$0xf]
    %v607 = vld [vmem:[%s2 + $0x14] sm:$0xf]
    %v608 = vld [vmem:[%s2 + $0x18] sm:$0xf]
    %v609 = vld [vmem:[%s2 + $0x1c] sm:$0xf]
    %v610 = vperm.slane %v21, 0
    %v619 = vunpack.c.l.b16 %v602
    %v620 = vunpack.c.l.b16 %v603
    %v621 = vunpack.c.l.b16 %v604
    %v622 = vunpack.c.l.b16 %v605
    %v623 = vunpack.c.l.b16 %v606
    %v624 = vunpack.c.l.b16 %v607
    %v625 = vunpack.c.l.b16 %v608
    %v626 = vunpack.c.l.b16 %v609
    %v627 = vpack.c.b16 %v620, %v619
    %v628 = vpack.c.b16 %v622, %v621
    %v629 = vpack.c.b16 %v624, %v623
    %v630 = vpack.c.b16 %v626, %v625
    %vm635 = vcmask 523264
    %v637 = vsel %vm635, %v601, 0
    %639 = vmatpush.bf16.msra.mxu0 0
    %640 = vmatpush.bf16.msra.mxu0 0
    %641 = vmatpush.bf16.msra.mxu0 0
    %642 = vmatpush.bf16.msra.mxu0 0
    %643 = vmatpush.bf16.msra.mxu0 %v630
    %644 = vmatpush.bf16.msra.mxu0 %v629
    %645 = vmatpush.bf16.msra.mxu0 %v628
    %646 = vmatpush.bf16.msra.mxu0 %v627
    %647 = vmatmul.bf16.gmra.mxu0 %v637
    %v648 = vpop.f32.mrf.mxu0
    %v649 = vadd.f32 %v610, %v648
    %v650 = vpop.f32.mrf.mxu0
    %v651 = vadd.f32 %v610, %v650
    %652 = vdwg.mxu0
    %v653 = vadd.f32 %v649, %v19
    %v654 = vadd.f32 %v651, %v20
    %v655 = vsel %vm39, %v653, 0.0
    %656 = vadd.xlane.f32.xlu0 %v655
    %v657 = vpop.xlane.xlu0 %656
    %v658 = vsel %vm39, %v654, 0.0
    %659 = vadd.xlane.f32.xlu0 %v658
    %v660 = vpop.xlane.xlu0 %659
    %v661 = vrcp.pop 16.0
    %v662 = vmul.f32 16.0, %v661
    %v663 = vsub.f32 1.0, %v662
    %v664 = vmul.f32 %v661, %v663
    %v665 = vadd.f32 %v661, %v664
    %vm666 = vweird.f32 %v661
    %v667 = vsel %vm666, %v661, %v665
    %v668 = vmul.f32 %v657, %v667
    %v669 = vmul.f32 %v660, %v667
    %v670 = vsub.f32 %v653, %v668
    %v671 = vsub.f32 %v654, %v669
    %v672 = vmul.f32 %v670, %v670
    %v673 = vmul.f32 %v671, %v671
    %v674 = vsel %vm39, %v672, 0.0
    %675 = vadd.xlane.f32.xlu0 %v674
    %v676 = vpop.xlane.xlu0 %675
    %v677 = vsel %vm39, %v673, 0.0
    %678 = vadd.xlane.f32.xlu0 %v677
    %v679 = vpop.xlane.xlu0 %678
    %v680 = vmul.f32 %v676, %v667
    %v681 = vmul.f32 %v679, %v667
    %v682 = vadd.f32 %v680, 1e-05
    %v683 = vadd.f32 %v681, 1e-05
    %v684 = vrsqrt.pop %v682
    %v685 = vmul.f32 %v684, %v682
    %v686 = vmul.f32 %v685, %v684
    %v687 = vmul.f32 0.5, %v686
    %v688 = vsub.f32 1.5, %v687
    %v689 = vmul.f32 %v684, %v688
    %vm690 = vweird.f32 %v682
    %vm691 = vweird.f32 %v684
    %vm692 = vmor %vm690, %vm691
    %v693 = vsel %vm692, %v684, %v689
    %v694 = vrsqrt.pop %v683
    %v695 = vmul.f32 %v694, %v683
    %v696 = vmul.f32 %v695, %v694
    %v697 = vmul.f32 0.5, %v696
    %v698 = vsub.f32 1.5, %v697
    %v699 = vmul.f32 %v694, %v698
    %vm700 = vweird.f32 %v683
    %vm701 = vweird.f32 %v694
    %vm702 = vmor %vm700, %vm701
    %v703 = vsel %vm702, %v694, %v699
    %v704 = vmul.f32 %v670, %v693
    %v705 = vmul.f32 %v671, %v703
    %v706 = vperm.slane %v22, 0
    %v707 = vmul.f32 %v704, %v706
    %v708 = vmul.f32 %v705, %v706
    %v709 = vperm.slane %v23, 0
    %v710 = vadd.f32 %v707, %v709
    %v711 = vadd.f32 %v708, %v709
    %v712 = vpack.c.bf16 %v651, %v649
    %v713 = vld [vmem:[%s1 + $0x4] sm:$0xff]
    %v714 = vld [vmem:[%s1 + $0x10] sm:$0xff]
    %v717 = vunpack.c.l.b16 %v713
    %v718 = vunpack.c.h.b16 %v713
    %v719 = vunpack.c.l.b16 %v714
    %v720 = vunpack.c.h.b16 %v714
    %v721 = vpack.c.b16 %v719, %v717
    %v722 = vpack.c.b16 %v720, %v718
    %723 = vrot.lane.b32.xlu0 %v721, 64
    %v724 = vpop.permute.xlu0 %723
    %725 = vrot.lane.b32.xlu0 %v722, 64
    %v726 = vpop.permute.xlu0 %725
    %vm727 = vcmask 523264
    %v728 = vsel %vm727, %v724, %v726
    %v731 = vsel %vm39, %v712, 0
    %733 = vmatpush.bf16.msra.mxu0 0
    %734 = vmatpush.bf16.msra.mxu0 0
    %735 = vmatpush.bf16.msra.mxu0 0
    %736 = vmatpush.bf16.msra.mxu0 0
    %737 = vmatpush.bf16.msra.mxu0 0
    %738 = vmatpush.bf16.msra.mxu0 0
    %739 = vmatpush.bf16.msra.mxu0 0
    %740 = vmatpush.bf16.msra.mxu0 %v728
    %741 = vmatmul.bf16.gmra.mxu0 %v731
    %v742 = vpop.f32.mrf.mxu0
    %v743 = vadd.f32 0.0, %v742
    %v744 = vpop.f32.mrf.mxu0
    %v745 = vadd.f32 0.0, %v744
    %746 = vdwg.mxu0
    %v747 = vmul.f32 %v743, 0.5
    %v748 = vmul.f32 %v745, 0.5
    %v749 = vrcp.pop 1.4142135
    %v750 = vmul.f32 1.4142135, %v749
    %v751 = vsub.f32 1.0, %v750
    %v752 = vmul.f32 %v749, %v751
    %v753 = vadd.f32 %v749, %v752
    %vm754 = vweird.f32 %v749
    %v755 = vsel %vm754, %v749, %v753
    %v756 = vmul.f32 %v743, %v755
    %v757 = vmul.f32 %v745, %v755
    %v758 = vmul.f32 %v756, %v756
    %v759 = vmin.f32 16.0, %v758
    %v760 = vmul.f32 %v759, 2.1237322e-06
    %v761 = vadd.f32 %v760, 0.00028619796
    %v762 = vmul.f32 %v759, %v761
    %v763 = vadd.f32 %v762, 0.0036580483
    %v764 = vmul.f32 %v759, %v763
    %v765 = vadd.f32 %v764, 0.05243302
    %v766 = vmul.f32 %v759, %v765
    %v767 = vadd.f32 %v766, 0.18741608
    %v768 = vmul.f32 %v759, %v767
    %v769 = vadd.f32 %v768, 1.1283791
    %v770 = vmul.f32 %v756, %v769
    %v771 = vmul.f32 %v759, 3.8918573e-05
    %v772 = vadd.f32 %v771, 0.001143296
    %v773 = vmul.f32 %v759, %v772
    %v774 = vadd.f32 %v773, 0.014752088
    %v775 = vmul.f32 %v759, %v774
    %v776 = vadd.f32 %v775, 0.112945676
    %v777 = vmul.f32 %v759, %v776
    %v778 = vadd.f32 %v777, 0.4994258
    %v779 = vmul.f32 %v759, %v778
    %v780 = vadd.f32 %v779, 1.0
    %v781 = vrcp.pop %v780
    %v782 = vmul.f32 %v780, %v781
    %v783 = vsub.f32 1.0, %v782
    %v784 = vmul.f32 %v781, %v783
    %v785 = vadd.f32 %v781, %v784
    %vm786 = vweird.f32 %v780
    %vm787 = vweird.f32 %v781
    %vm788 = vmor %vm786, %vm787
    %v789 = vsel %vm788, %v781, %v785
    %v790 = vand.u32 2147483647, %v780
    %vm791 = vcmp.eq.f32.partialorder %v790, 8.507059e+37
    %v792 = vand.u32 %v780, 2147483648
    %v793 = vor.u32 1.1754944e-38, %v792
    %v794 = vsel %vm791, %v793, %v789
    %v795 = vmul.f32 %v770, %v794
    %v796 = vmin.f32 %v795, 1.0
    %v797 = vmax.f32 %v796, -1.0
    %v798 = vmul.f32 %v757, %v757
    %v799 = vmin.f32 16.0, %v798
    %v800 = vmul.f32 %v799, 2.1237322e-06
    %v801 = vadd.f32 %v800, 0.00028619796
    %v802 = vmul.f32 %v799, %v801
    %v803 = vadd.f32 %v802, 0.0036580483
    %v804 = vmul.f32 %v799, %v803
    %v805 = vadd.f32 %v804, 0.05243302
    %v806 = vmul.f32 %v799, %v805
    %v807 = vadd.f32 %v806, 0.18741608
    %v808 = vmul.f32 %v799, %v807
    %v809 = vadd.f32 %v808, 1.1283791
    %v810 = vmul.f32 %v757, %v809
    %v811 = vmul.f32 %v799, 3.8918573e-05
    %v812 = vadd.f32 %v811, 0.001143296
    %v813 = vmul.f32 %v799, %v812
    %v814 = vadd.f32 %v813, 0.014752088
    %v815 = vmul.f32 %v799, %v814
    %v816 = vadd.f32 %v815, 0.112945676
    %v817 = vmul.f32 %v799, %v816
    %v818 = vadd.f32 %v817, 0.4994258
    %v819 = vmul.f32 %v799, %v818
    %v820 = vadd.f32 %v819, 1.0
    %v821 = vrcp.pop %v820
    %v822 = vmul.f32 %v820, %v821
    %v823 = vsub.f32 1.0, %v822
    %v824 = vmul.f32 %v821, %v823
    %v825 = vadd.f32 %v821, %v824
    %vm826 = vweird.f32 %v820
    %vm827 = vweird.f32 %v821
    %vm828 = vmor %vm826, %vm827
    %v829 = vsel %vm828, %v821, %v825
    %v830 = vand.u32 2147483647, %v820
    %vm831 = vcmp.eq.f32.partialorder %v830, 8.507059e+37
    %v832 = vand.u32 %v820, 2147483648
    %v833 = vor.u32 1.1754944e-38, %v832
    %v834 = vsel %vm831, %v833, %v829
    %v835 = vmul.f32 %v810, %v834
    %v836 = vmin.f32 %v835, 1.0
    %v837 = vmax.f32 %v836, -1.0
    %v838 = vadd.f32 %v797, 1.0
    %v839 = vadd.f32 %v837, 1.0
    %v840 = vmul.f32 %v747, %v838
    %v841 = vmul.f32 %v748, %v839
    %844 = vrot.lane.b32.xlu0 %v743, 64
    %v845 = vpop.permute.xlu0 %844
    %846 = vrot.lane.b32.xlu0 %v745, 64
    %v847 = vpop.permute.xlu0 %846
    %v850 = vmul.f32 %v840, %v845
    %v851 = vmul.f32 %v841, %v847
    %v852 = vpack.c.bf16 %v851, %v850
    %v853 = vld [vmem:[%s2 + $0x20] sm:$0xf]
    %v854 = vld [vmem:[%s2 + $0x24] sm:$0xf]
    %v855 = vld [vmem:[%s2 + $0x28] sm:$0xf]
    %v856 = vld [vmem:[%s2 + $0x2c] sm:$0xf]
    %v857 = vld [vmem:[%s2 + $0x30] sm:$0xf]
    %v858 = vld [vmem:[%s2 + $0x34] sm:$0xf]
    %v859 = vld [vmem:[%s2 + $0x38] sm:$0xf]
    %v860 = vld [vmem:[%s2 + $0x3c] sm:$0xf]
    %v869 = vunpack.c.l.b16 %v853
    %v870 = vunpack.c.l.b16 %v854
    %v871 = vunpack.c.l.b16 %v855
    %v872 = vunpack.c.l.b16 %v856
    %v873 = vunpack.c.l.b16 %v857
    %v874 = vunpack.c.l.b16 %v858
    %v875 = vunpack.c.l.b16 %v859
    %v876 = vunpack.c.l.b16 %v860
    %v877 = vpack.c.b16 %v870, %v869
    %v878 = vpack.c.b16 %v872, %v871
    %v879 = vpack.c.b16 %v874, %v873
    %v880 = vpack.c.b16 %v876, %v875
    %v886 = vsel %vm635, %v852, 0
    %888 = vmatpush.bf16.msra.mxu0 0
    %889 = vmatpush.bf16.msra.mxu0 0
    %890 = vmatpush.bf16.msra.mxu0 0
    %891 = vmatpush.bf16.msra.mxu0 0
    %892 = vmatpush.bf16.msra.mxu0 %v880
    %893 = vmatpush.bf16.msra.mxu0 %v879
    %894 = vmatpush.bf16.msra.mxu0 %v878
    %895 = vmatpush.bf16.msra.mxu0 %v877
    %896 = vmatmul.bf16.gmra.mxu0 %v886
    %v897 = vpop.f32.mrf.mxu0
    %v898 = vadd.f32 %v710, %v897
    %v899 = vpop.f32.mrf.mxu0
    %v900 = vadd.f32 %v711, %v899
    %901 = vdwg.mxu0
    %v902 = vsel %vm39, %v898, 0.0
    %903 = vadd.xlane.f32.xlu0 %v902
    %v904 = vpop.xlane.xlu0 %903
    %v905 = vsel %vm39, %v900, 0.0
    %906 = vadd.xlane.f32.xlu0 %v905
    %v907 = vpop.xlane.xlu0 %906
    %v908 = vmul.f32 %v904, %v667
    %v909 = vmul.f32 %v907, %v667
    %v910 = vsub.f32 %v898, %v908
    %v911 = vsub.f32 %v900, %v909
    %v912 = vmul.f32 %v910, %v910
    %v913 = vmul.f32 %v911, %v911
    %v914 = vsel %vm39, %v912, 0.0
    %915 = vadd.xlane.f32.xlu0 %v914
    %v916 = vpop.xlane.xlu0 %915
    %v917 = vsel %vm39, %v913, 0.0
    %918 = vadd.xlane.f32.xlu0 %v917
    %v919 = vpop.xlane.xlu0 %918
    %v920 = vmul.f32 %v916, %v667
    %v921 = vmul.f32 %v919, %v667
    %v922 = vadd.f32 %v920, 1e-05
    %v923 = vadd.f32 %v921, 1e-05
    %v924 = vrsqrt.pop %v922
    %v925 = vmul.f32 %v924, %v922
    %v926 = vmul.f32 %v925, %v924
    %v927 = vmul.f32 0.5, %v926
    %v928 = vsub.f32 1.5, %v927
    %v929 = vmul.f32 %v924, %v928
    %vm930 = vweird.f32 %v922
    %vm931 = vweird.f32 %v924
    %vm932 = vmor %vm930, %vm931
    %v933 = vsel %vm932, %v924, %v929
    %v934 = vrsqrt.pop %v923
    %v935 = vmul.f32 %v934, %v923
    %v936 = vmul.f32 %v935, %v934
    %v937 = vmul.f32 0.5, %v936
    %v938 = vsub.f32 1.5, %v937
    %v939 = vmul.f32 %v934, %v938
    %vm940 = vweird.f32 %v923
    %vm941 = vweird.f32 %v934
    %vm942 = vmor %vm940, %vm941
    %v943 = vsel %vm942, %v934, %v939
    %v944 = vmul.f32 %v910, %v933
    %v945 = vmul.f32 %v911, %v943
    %v946 = vperm.slane %v24, 0
    %v947 = vmul.f32 %v944, %v946
    %v948 = vmul.f32 %v945, %v946
    %v949 = vperm.slane %v25, 0
    %v950 = vadd.f32 %v947, %v949
    %v951 = vadd.f32 %v948, %v949
    %952 = vst.msk [vmem:[#allocation2] sm:$0xff] %vm39, %v950
    %953 = vst.msk [vmem:[#allocation2 + $0x8] sm:$0xff] %vm39, %v951
    // Predicated region
    $region18: #{transformer_encoder_block.1} parent=1 // pred_check
      _
    $region19: #{transformer_encoder_block.1} parent=1 // pred_check_branch
      %955 = sbr.rel (0) target = $region21
    $region20: #{transformer_encoder_block.1} parent=1 // pred_region
      %957 = vsyncadd [#allocation3], 0
      %s958 = sshll.u32 [#allocation2], 4
      %s959 = int_to_ptr.vmem [resolvable:$true] %s958
      %s960 = sshll.u32 %s4, 4
      %s961 = int_to_ptr.hbm [resolvable:$true] %s960
      %966 = dma.vmem_to_hbm [thread:$0]  %s959, 256, %s961, [#allocation3], 128, 128, 8
    $region21: #{transformer_encoder_block.1} parent=1 // pred_fallthru
      _
    // Predicated region
    $region22: #{transformer_encoder_block.1} parent=1 // pred_check
      _
    $region23: #{transformer_encoder_block.1} parent=1 // pred_check_branch
      %968 = sbr.rel (0) target = $region25
    $region24: #{transformer_encoder_block.1} parent=1 // pred_region
      %970 = dma.done [#allocation3], 256
    $region25: #{transformer_encoder_block.1} parent=1 // pred_fallthru
      _
    %971 = vsyncpa [#allocation3], 1

</llo_original>
